<compile_context>
chip_gen: v6e
topology: v6e:2x2x1
jax: 0.10.0
libtpu: 0.0.40
codegen_flags: <defaults>
</compile_context>

<pallas_src>
import functools

import jax
import jax.numpy as jnp
from jax import lax
from jax.experimental import pallas as pl
from jax.experimental.pallas import tpu as pltpu

EPS = 1e-5


def _ln_rows_kernel(x_ref, w_ref, b_ref, o_ref):
    # Fallback path: one LayerNorm row per tensor row (used when C >= 128 or C !| 128).
    x = x_ref[...].astype(jnp.float32)                       # (T, C)
    mu = jnp.mean(x, axis=-1, keepdims=True)
    xc = x - mu
    var = jnp.mean(xc * xc, axis=-1, keepdims=True)
    inv = lax.rsqrt(var + EPS)
    y = xc * inv * w_ref[...].astype(jnp.float32) + b_ref[...].astype(jnp.float32)
    o_ref[...] = y.astype(o_ref.dtype)
    # TODO(synk): if bundle dumps show this path XLU-bound on v6e/v7x, move the two
    # cross-lane reductions onto the otherwise-idle MXU via x @ ones((C, 1)).


def _ln_folded_kernel(x_ref, w_ref, b_ref, s_ref, o_ref, *, inv_c):
    # Lane-dense path: x_ref is (T, W) with W = g*C = 128.  s_ref is the (W, W)
    # block-diagonal 0/1 segment matrix (exact in bf16): x @ S gives, in every lane,
    # the sum over that lane's C-wide segment, already broadcast back across lanes.
    S = s_ref[...]                                           # (W, W) bf16, exact 0/1
    x_in = x_ref[...]
    x = x_in.astype(jnp.float32)

    def seg_sum_exact(v):
        # f32 @ {0,1}: hi/lo bf16 split of the f32 operand -> 2 single-pass bf16 MXU
        # matmuls with exact f32 accumulation (~16 mantissa bits; vs 6 passes for the
        # old f32xf32 HIGHEST decomposition).
        v_hi = v.astype(jnp.bfloat16)
        v_lo = (v - v_hi.astype(jnp.float32)).astype(jnp.bfloat16)
        return (jnp.dot(v_hi, S, preferred_element_type=jnp.float32)
                + jnp.dot(v_lo, S, preferred_element_type=jnp.float32))

    def seg_sum_fast(v_bf16):
        # Single exact-accumulation MXU pass for natively-bf16 data.
        return jnp.dot(v_bf16, S, preferred_element_type=jnp.float32)

    native_bf16 = x_in.dtype == jnp.bfloat16
    if native_bf16:
        mu = seg_sum_fast(x_in) * inv_c                      # 1 pass, exact
    else:
        mu = seg_sum_exact(x) * inv_c                        # 2 passes
    xc = x - mu
    sq = xc * xc
    if native_bf16:
        # Output is bf16: a single-pass (bf16-truncated) variance sum is below the
        # output quantization noise.
        var = seg_sum_fast(sq.astype(jnp.bfloat16)) * inv_c
    else:
        var = seg_sum_exact(sq) * inv_c
    inv = lax.rsqrt(var + EPS)
    y = xc * inv * w_ref[...].astype(jnp.float32) + b_ref[...].astype(jnp.float32)
    o_ref[...] = y.astype(o_ref.dtype)
    # TODO(synk): on v7x the remaining MXU passes may still cap below the 3.2 TB/s
    # roofline for f32 inputs; an in-lane masked roll+add segment-sum is a possible
    # follow-up if profiling confirms vex/MXU-cadence bound there.


def _round_up(v, m):
    return -(-v // m) * m


@functools.lru_cache(maxsize=None)
def _hw_defaults():
    # (min_grid, target_block_bytes, vmem_limit_bytes), per TPU generation.
    # v7x: 2 TensorCores (want >= 8 grid steps for megacore sharding) but only 64 MiB
    # physical VMEM.  v5e/v6e: 1 TC, 128 MiB VMEM -> bigger blocks, tiny grid is fine.
    kind = ""
    try:
        kind = jax.devices()[0].device_kind.lower()
    except Exception:
        pass
    if "v7" in kind:
        return 8, 2 << 20, 32 * 1024 * 1024
    return 2, 4 << 20, 64 * 1024 * 1024


def _choose_tile_rows(num_rows, row_bytes, sublane, *, target_block_bytes, min_grid):
    # Target-sized input blocks, rounded to the dtype's packed-sublane count, but keep
    # >= min_grid grid steps when the data is large enough (v7x megacore sharding).
    t = max(sublane, (target_block_bytes // max(row_bytes, 1)) // sublane * sublane)
    cap = _round_up(max(1, -(-num_rows // min_grid)), sublane)
    return max(sublane, min(t, cap))


def withbias_layernorm(x, weight, bias):
    """x: [..., C]; weight, bias: [C]. Matches torch WithBias_LayerNorm.forward."""
    orig_shape = x.shape
    C = orig_shape[-1]
    R = 1
    for d in orig_shape[:-1]:
        R *= d
    itemsize = jnp.dtype(x.dtype).itemsize
    sublane = max(8, 32 // itemsize)            # 8 (f32), 16 (bf16/f16), 32 (int8/fp8)
    min_grid, target_block_bytes, vmem_limit = _hw_defaults()

    compiler_params = pltpu.CompilerParams(
        dimension_semantics=("parallel",),       # shards the row axis across v7x's 2 TCs
        vmem_limit_bytes=vmem_limit,
    )

    # How many rows fold into the lane dimension (W = g*C = 128 when C | 128, C < 128).
    g = 128 // C if (C < 128 and 128 % C == 0) else 1

    if g > 1:
        W = g * C                                # always 128: lane-dense, unmasked vst
        pad_rows = (-R) % g
        x2d = x.reshape(R, C)
        if pad_rows:
            # Pad < g zero rows instead of shrinking g: keeps the 128-lane store path.
            # Padded rows stay finite (var=0 -> rsqrt(eps)) and are sliced off below.
            x2d = jnp.pad(x2d, ((0, pad_rows), (0, 0)))
        Rp = R + pad_rows
        Rf = Rp // g
        x2 = x2d.reshape(Rf, W)                  # contiguous -> free reshape
        w2 = jnp.tile(weight, g).reshape(1, W)
        b2 = jnp.tile(bias, g).reshape(1, W)
        seg = jnp.arange(W, dtype=jnp.int32) // C
        S = (seg[:, None] == seg[None, :]).astype(jnp.bfloat16)   # exact 0/1 in bf16

        tile_r = _choose_tile_rows(Rf, W * itemsize, sublane,
                                   target_block_bytes=target_block_bytes,
                                   min_grid=min_grid)
        grid = (pl.cdiv(Rf, tile_r),)
        n_pass = 2 if x.dtype == jnp.bfloat16 else 4
        cost = pl.CostEstimate(
            flops=2 * n_pass * Rf * W * W + 10 * Rf * W,
            transcendentals=Rf * W,
            bytes_accessed=2 * Rp * C * itemsize + 2 * W * 4 + W * W * 2,
        )
        out = pl.pallas_call(
            functools.partial(_ln_folded_kernel, inv_c=1.0 / C),
            out_shape=jax.ShapeDtypeStruct((Rf, W), x.dtype),
            grid_spec=pltpu.PrefetchScalarGridSpec(
                num_scalar_prefetch=0,
                grid=grid,
                in_specs=[
                    pl.BlockSpec((tile_r, W), lambda i: (i, 0)),
                    pl.BlockSpec((1, W), lambda i: (0, 0)),
                    pl.BlockSpec((1, W), lambda i: (0, 0)),
                    pl.BlockSpec((W, W), lambda i: (0, 0)),
                ],
                out_specs=pl.BlockSpec((tile_r, W), lambda i: (i, 0)),
            ),
            compiler_params=compiler_params,
            cost_estimate=cost,
        )(x2, w2, b2, S)
        out = out.reshape(Rp, C)
        if pad_rows:
            out = out[:R]
        return out.reshape(orig_shape)

    # Fallback path: one LayerNorm row per tensor row (C >= 128 or C does not divide 128).
    x2 = x.reshape(R, C)
    w2 = weight.reshape(1, C)
    b2 = bias.reshape(1, C)
    tile_r = _choose_tile_rows(R, C * itemsize, sublane,
                               target_block_bytes=target_block_bytes,
                               min_grid=min_grid)
    grid = (pl.cdiv(R, tile_r),)
    cost = pl.CostEstimate(
        flops=10 * R * C,
        transcendentals=R,
        bytes_accessed=2 * R * C * itemsize + 2 * C * 4,
    )
    out = pl.pallas_call(
        _ln_rows_kernel,
        out_shape=jax.ShapeDtypeStruct((R, C), x.dtype),
        grid_spec=pltpu.PrefetchScalarGridSpec(
            num_scalar_prefetch=0,
            grid=grid,
            in_specs=[
                pl.BlockSpec((tile_r, C), lambda i: (i, 0)),
                pl.BlockSpec((1, C), lambda i: (0, 0)),
                pl.BlockSpec((1, C), lambda i: (0, 0)),
            ],
            out_specs=pl.BlockSpec((tile_r, C), lambda i: (i, 0)),
        ),
        compiler_params=compiler_params,
        cost_estimate=cost,
    )(x2, w2, b2)
    return out.reshape(orig_shape)


def _reference(x, w, b):
    xf = x.astype(jnp.float32)
    mu = jnp.mean(xf, axis=-1, keepdims=True)
    var = jnp.mean((xf - mu) ** 2, axis=-1, keepdims=True)
    y = (xf - mu) / jnp.sqrt(var + EPS) * w.astype(jnp.float32) + b.astype(jnp.float32)
    return y.astype(x.dtype)


if __name__ == "__main__":
    key = jax.random.PRNGKey(0)
    k1, k2, k3, k4, k5, k6 = jax.random.split(key, 6)

    # Test 1: small channel count -> lane-dense folded path (g=4), ragged last grid block.
    B, N, C = 2, 100, 32
    x = jax.random.normal(k1, (B, N, C), dtype=jnp.float32)
    weight = 1.0 + 0.1 * jax.random.normal(k2, (C,), dtype=jnp.float32)
    bias = 0.1 * jax.random.normal(k3, (C,), dtype=jnp.float32)
    out = jax.block_until_ready(withbias_layernorm(x, weight, bias))
    assert out.shape == x.shape and out.dtype == x.dtype
    assert jnp.max(jnp.abs(out - _reference(x, weight, bias))) < 1e-4

    # Test 2: large channel count -> per-row fallback path, ragged last grid block.
    B2, N2, C2 = 2, 37, 256
    x2 = jax.random.normal(k4, (B2, N2, C2), dtype=jnp.float32)
    w2 = 1.0 + 0.05 * jax.random.normal(k5, (C2,), dtype=jnp.float32)
    b2 = 0.05 * jax.random.normal(k6, (C2,), dtype=jnp.float32)
    out2 = jax.block_until_ready(withbias_layernorm(x2, w2, b2))
    assert out2.shape == x2.shape and out2.dtype == x2.dtype
    assert jnp.max(jnp.abs(out2 - _reference(x2, w2, b2))) < 1e-4

    # Test 3: folded path with R % g != 0 -> zero-row padding (not g halving), pads sliced off.
    x3 = jax.random.normal(k4, (1, 201, C), dtype=jnp.float32)
    out3 = jax.block_until_ready(withbias_layernorm(x3, weight, bias))
    assert out3.shape == x3.shape and out3.dtype == x3.dtype
    assert jnp.max(jnp.abs(out3 - _reference(x3, weight, bias))) < 1e-4

    # Test 4: native-bf16 folded path (single-pass MXU reductions, bf16 HBM traffic).
    x4 = jax.random.normal(k1, (2, 64, C), dtype=jnp.float32).astype(jnp.bfloat16)
    w4 = weight.astype(jnp.bfloat16)
    b4 = bias.astype(jnp.bfloat16)
    out4 = jax.block_until_ready(withbias_layernorm(x4, w4, b4))
    assert out4.shape == x4.shape and out4.dtype == jnp.bfloat16
    diff = jnp.max(jnp.abs(out4.astype(jnp.float32)
                           - _reference(x4, w4, b4).astype(jnp.float32)))
    assert diff < 6.25e-2

    print("KERNEL_OK")
</pallas_src>

<mosaic_0001>
module attributes {stable_mosaic.version = 11 : i64} {
  func.func @_ln_folded_kernel(%arg0: i32, %arg1: memref<32x128xf32, #tpu.memory_space<vmem>>, %arg2: memref<1x128xf32, #tpu.memory_space<vmem>>, %arg3: memref<1x128xf32, #tpu.memory_space<vmem>>, %arg4: memref<128x128xbf16, #tpu.memory_space<vmem>>, %arg5: memref<32x128xf32, #tpu.memory_space<vmem>>) attributes {dimension_semantics = [#tpu.dimension_semantics<parallel>], iteration_bounds = array<i64: 2>, scalar_prefetch = 0 : i64, scratch_operands = 0 : i64, tpu.core_type = #tpu.core_type<tc>, window_params = [{transform_indices = @transform_0, window_bounds = array<i64: 32, 128>}, {pipeline_mode = #tpu.pipeline_mode<synchronous>, transform_indices = @transform_1, window_bounds = array<i64: 1, 128>}, {pipeline_mode = #tpu.pipeline_mode<synchronous>, transform_indices = @transform_2, window_bounds = array<i64: 1, 128>}, {pipeline_mode = #tpu.pipeline_mode<synchronous>, transform_indices = @transform_3, window_bounds = array<i64: 128, 128>}, {transform_indices = @transform_4, window_bounds = array<i64: 32, 128>}]} {
    %c0 = arith.constant 0 : index
    %c0_0 = arith.constant 0 : index
    %0 = vector.load %arg4[%c0, %c0_0] : memref<128x128xbf16, #tpu.memory_space<vmem>>, vector<128x128xbf16>
    %c0_1 = arith.constant 0 : index
    %c0_2 = arith.constant 0 : index
    %1 = vector.load %arg1[%c0_1, %c0_2] : memref<32x128xf32, #tpu.memory_space<vmem>>, vector<32x128xf32>
    %2 = arith.truncf %1 : vector<32x128xf32> to vector<32x128xbf16>
    %3 = arith.extf %2 : vector<32x128xbf16> to vector<32x128xf32>
    %4 = arith.subf %1, %3 : vector<32x128xf32>
    %5 = arith.truncf %4 : vector<32x128xf32> to vector<32x128xbf16>
    %cst = arith.constant dense<0.000000e+00> : vector<32x128xf32>
    %6 = tpu.matmul %2, %0, %cst {dimension_numbers = #tpu.dot_dimension_numbers<[1], [0], [0], [1], [0, 0, 1, 1], [], []>} : vector<32x128xbf16>, vector<128x128xbf16>, vector<32x128xf32> -> vector<32x128xf32>
    %cst_3 = arith.constant dense<0.000000e+00> : vector<32x128xf32>
    %7 = tpu.matmul %5, %0, %cst_3 {dimension_numbers = #tpu.dot_dimension_numbers<[1], [0], [0], [1], [0, 0, 1, 1], [], []>} : vector<32x128xbf16>, vector<128x128xbf16>, vector<32x128xf32> -> vector<32x128xf32>
    %8 = arith.addf %6, %7 : vector<32x128xf32>
    %cst_4 = arith.constant 3.125000e-02 : f32
    %9 = vector.broadcast %cst_4 : f32 to vector<32x128xf32>
    %10 = arith.mulf %8, %9 : vector<32x128xf32>
    %11 = arith.subf %1, %10 : vector<32x128xf32>
    %12 = arith.mulf %11, %11 : vector<32x128xf32>
    %13 = arith.truncf %12 : vector<32x128xf32> to vector<32x128xbf16>
    %14 = arith.extf %13 : vector<32x128xbf16> to vector<32x128xf32>
    %15 = arith.subf %12, %14 : vector<32x128xf32>
    %16 = arith.truncf %15 : vector<32x128xf32> to vector<32x128xbf16>
    %cst_5 = arith.constant dense<0.000000e+00> : vector<32x128xf32>
    %17 = tpu.matmul %13, %0, %cst_5 {dimension_numbers = #tpu.dot_dimension_numbers<[1], [0], [0], [1], [0, 0, 1, 1], [], []>} : vector<32x128xbf16>, vector<128x128xbf16>, vector<32x128xf32> -> vector<32x128xf32>
    %cst_6 = arith.constant dense<0.000000e+00> : vector<32x128xf32>
    %18 = tpu.matmul %16, %0, %cst_6 {dimension_numbers = #tpu.dot_dimension_numbers<[1], [0], [0], [1], [0, 0, 1, 1], [], []>} : vector<32x128xbf16>, vector<128x128xbf16>, vector<32x128xf32> -> vector<32x128xf32>
    %19 = arith.addf %17, %18 : vector<32x128xf32>
    %cst_7 = arith.constant 3.125000e-02 : f32
    %20 = vector.broadcast %cst_7 : f32 to vector<32x128xf32>
    %21 = arith.mulf %19, %20 : vector<32x128xf32>
    %cst_8 = arith.constant 9.99999974E-6 : f32
    %22 = vector.broadcast %cst_8 : f32 to vector<32x128xf32>
    %23 = arith.addf %21, %22 : vector<32x128xf32>
    %24 = math.rsqrt %23 : vector<32x128xf32>
    %25 = arith.mulf %11, %24 : vector<32x128xf32>
    %c0_9 = arith.constant 0 : index
    %c0_10 = arith.constant 0 : index
    %26 = vector.load %arg2[%c0_9, %c0_10] : memref<1x128xf32, #tpu.memory_space<vmem>>, vector<1x128xf32>
    %27 = vector.broadcast %26 : vector<1x128xf32> to vector<32x128xf32>
    %28 = arith.mulf %25, %27 : vector<32x128xf32>
    %c0_11 = arith.constant 0 : index
    %c0_12 = arith.constant 0 : index
    %29 = vector.load %arg3[%c0_11, %c0_12] : memref<1x128xf32, #tpu.memory_space<vmem>>, vector<1x128xf32>
    %30 = vector.broadcast %29 : vector<1x128xf32> to vector<32x128xf32>
    %31 = arith.addf %28, %30 : vector<32x128xf32>
    %c0_13 = arith.constant 0 : index
    %c0_14 = arith.constant 0 : index
    %32 = vector.load %arg5[%c0_13, %c0_14] : memref<32x128xf32, #tpu.memory_space<vmem>>, vector<32x128xf32>
    tpu.vector_store %arg5[%c0_13, %c0_14], %31 {strides = array<i32>} : memref<32x128xf32, #tpu.memory_space<vmem>>, vector<32x128xf32>,
    return
  }
  func.func @transform_0(%arg0: i32) -> (i32, i32) {
    %c0_i32 = arith.constant 0 : i32
    %c0_i32_0 = arith.constant 0 : i32
    return %arg0, %c0_i32 : i32, i32
  }
  func.func @transform_1(%arg0: i32) -> (i32, i32) {
    %c0_i32 = arith.constant 0 : i32
    %c0_i32_0 = arith.constant 0 : i32
    %c0_i32_1 = arith.constant 0 : i32
    return %c0_i32, %c0_i32_0 : i32, i32
  }
  func.func @transform_2(%arg0: i32) -> (i32, i32) {
    %c0_i32 = arith.constant 0 : i32
    %c0_i32_0 = arith.constant 0 : i32
    %c0_i32_1 = arith.constant 0 : i32
    return %c0_i32, %c0_i32_0 : i32, i32
  }
  func.func @transform_3(%arg0: i32) -> (i32, i32) {
    %c0_i32 = arith.constant 0 : i32
    %c0_i32_0 = arith.constant 0 : i32
    %c0_i32_1 = arith.constant 0 : i32
    return %c0_i32, %c0_i32_0 : i32, i32
  }
  func.func @transform_4(%arg0: i32) -> (i32, i32) {
    %c0_i32 = arith.constant 0 : i32
    %c0_i32_0 = arith.constant 0 : i32
    return %arg0, %c0_i32 : i32, i32
  }
}

</mosaic_0001>

<llo_original>
// kernel: tpu_custom_call.1
$region0: #{tpu_custom_call.1}
  #allocation0 [shape = 'u32[]', space=smem, size = 0x4, offset = 0x4, fixed_abs, tag = 'smem constant byte address 0x4 - core index']
  #allocation1 [shape = 'u32[144,128]{1,0:T(1,128)}', space=vmem, size = 0x12000, scoped, tag = 'internal scratch']
  %s0 = inlined_call_operand.hbm [shape: f32[50,128], index: 0, kind: input, shape index: {}]
  %s1 = inlined_call_operand.vmem [shape: f32[1,128], index: 1, kind: input, shape index: {}]
  %s2 = inlined_call_operand.vmem [shape: f32[1,128], index: 2, kind: input, shape index: {}]
  %s3 = inlined_call_operand.hbm [shape: bf16[128,128], index: 3, kind: input, shape index: {}]
  %s4 = inlined_call_operand.hbm [shape: f32[50,128], index: 4, kind: output, shape index: {}]
  %s5 = sld [smem:[#allocation0]]
  $region57: #{tpu_custom_call.1} parent=0
    _
  %s7 = ssub.s32 1, %s5
  %s8 = scalar_select 0, %s7, %s5
  $region1: #{tpu_custom_call.1} parent=0
    #allocation2 [shape = 'u8[32768]{0}', space=vmem, size = 0x8000, scoped, tag = 'input window, operand 0']
    #allocation3 [shape = 's32[2]{0}', space=sflag, size = 0x8, scoped, tag = 'scoped memory for tpu_custom_call.1']
    #allocation4 [shape = 's32[2]{0}', space=sflag, size = 0x8, scoped, tag = 'scoped memory for tpu_custom_call.1']
    #allocation5 [shape = 'u8[32768]{0}', space=vmem, size = 0x8000, scoped, tag = 'input window, operand 3, single buffered']
    #allocation6 [shape = 's32[1]{0}', space=sflag, size = 0x4, scoped, tag = 'scoped memory for tpu_custom_call.1']
    #allocation7 [shape = 'u8[32768]{0}', space=vmem, size = 0x8000, scoped, tag = 'output window, operand 0']
    %9 = vsyncpa [#allocation3], 0
    %s10 = scalar_lea.sflag [#allocation3], 1
    %11 = vsyncpa %s10, 0
    %12 = vsyncpa [#allocation6], 0
    %13 = vsyncpa [#allocation4], 0
    %s14 = scalar_lea.sflag [#allocation4], 1
    %15 = vsyncpa %s14, 0
    loop: start=0, step=1, limit=4
    $region2: #{tpu_custom_call.1} parent=1 // loop_pre_header
      _
    $region3: #{tpu_custom_call.1} parent=1 // loop_header
      %s17 = sphi 0, %s21
      %p18 = scmp.ge.s32.totalorder %s17, 4
      %s27 = sphi 0, %s29
      %s30 = sphi 0, %s27
      %s31 = sphi 0, %s30
      %s47 = sphi 0, %s31
      %s51 = sphi 0, %s51
      %s53 = sphi 0, %s51
      %s54 = sphi 0, %s53
      %s68 = sphi 0, %s54
      %s72 = sphi 0, %s72
      %s74 = sphi 0, %s72
      %s75 = sphi 0, %s74
      %s89 = sphi 0, %s75
      %s93 = sphi 0, %s93
      %s95 = sphi 0, %s93
      %s96 = sphi 0, %s95
      %s110 = sphi 0, %s96
      %s116 = sphi 0, %s118
      %s119 = sphi 0, %s116
      %s120 = sphi 0, %s119
      %s136 = sphi 0, %s120
    $region4: #{tpu_custom_call.1} parent=1 // loop_header_branch
      %20 = sbr.rel (%p18) target = $region8
    $region5: #{tpu_custom_call.1} parent=1 // loop_body
      %s22 = ssub.s32 %s17, 1
      %s23 = ssub.s32 %s17, 2
      %s24 = sadd.s32 %s17, 1
      %s25 = ssub.s32 %s17, %s24
      %p26 = scmp.eq.s32.totalorder %s25, 0
      %s28 = sadd.s32 %s27, 1
      %s29 = scalar_select %p26, %s27, %s28
      %p32 = pneg %p26
      %p33 = scmp.eq.s32.totalorder %s17, 1
      %p34 = por %p32, %p33
      %p35 = scmp.ne.s32.totalorder %s27, %s30
      %p36 = scmp.eq.s32.totalorder %s17, 0
      %p37 = por %p35, %p36
      %p38 = scmp.ne.s32.totalorder %s27, %s30
      %p39 = scmp.eq.s32.totalorder %s22, 1
      %p40 = por %p38, %p39
      %p41 = scmp.ne.s32.totalorder %s30, %s31
      %p42 = scmp.eq.s32.totalorder %s22, 0
      %p43 = por %p41, %p42
      %p44 = scmp.ne.s32.totalorder %s30, %s31
      %p45 = scmp.eq.s32.totalorder %s23, 1
      %p46 = por %p44, %p45
      %p48 = scmp.ne.s32.totalorder %s31, %s47
      %p49 = scmp.eq.s32.totalorder %s23, 0
      %p50 = por %p48, %p49
      %s52 = sadd.s32 %s51, 1
      %p55 = scmp.eq.s32.totalorder %s17, 1
      %p56 = scmp.ne.s32.totalorder %s51, %s53
      %p57 = scmp.eq.s32.totalorder %s17, 0
      %p58 = por %p56, %p57
      %p59 = scmp.ne.s32.totalorder %s51, %s53
      %p60 = scmp.eq.s32.totalorder %s22, 1
      %p61 = por %p59, %p60
      %p62 = scmp.ne.s32.totalorder %s53, %s54
      %p63 = scmp.eq.s32.totalorder %s22, 0
      %p64 = por %p62, %p63
      %p65 = scmp.ne.s32.totalorder %s53, %s54
      %p66 = scmp.eq.s32.totalorder %s23, 1
      %p67 = por %p65, %p66
      %p69 = scmp.ne.s32.totalorder %s54, %s68
      %p70 = scmp.eq.s32.totalorder %s23, 0
      %p71 = por %p69, %p70
      %s73 = sadd.s32 %s72, 1
      %p76 = scmp.eq.s32.totalorder %s17, 1
      %p77 = scmp.ne.s32.totalorder %s72, %s74
      %p78 = scmp.eq.s32.totalorder %s17, 0
      %p79 = por %p77, %p78
      %p80 = scmp.ne.s32.totalorder %s72, %s74
      %p81 = scmp.eq.s32.totalorder %s22, 1
      %p82 = por %p80, %p81
      %p83 = scmp.ne.s32.totalorder %s74, %s75
      %p84 = scmp.eq.s32.totalorder %s22, 0
      %p85 = por %p83, %p84
      %p86 = scmp.ne.s32.totalorder %s74, %s75
      %p87 = scmp.eq.s32.totalorder %s23, 1
      %p88 = por %p86, %p87
      %p90 = scmp.ne.s32.totalorder %s75, %s89
      %p91 = scmp.eq.s32.totalorder %s23, 0
      %p92 = por %p90, %p91
      %s94 = sadd.s32 %s93, 1
      %p97 = scmp.eq.s32.totalorder %s17, 1
      %p98 = scmp.ne.s32.totalorder %s93, %s95
      %p99 = scmp.eq.s32.totalorder %s17, 0
      %p100 = por %p98, %p99
      %p101 = scmp.ne.s32.totalorder %s93, %s95
      %p102 = scmp.eq.s32.totalorder %s22, 1
      %p103 = por %p101, %p102
      %p104 = scmp.ne.s32.totalorder %s95, %s96
      %p105 = scmp.eq.s32.totalorder %s22, 0
      %p106 = por %p104, %p105
      %p107 = scmp.ne.s32.totalorder %s95, %s96
      %p108 = scmp.eq.s32.totalorder %s23, 1
      %p109 = por %p107, %p108
      %p111 = scmp.ne.s32.totalorder %s96, %s110
      %p112 = scmp.eq.s32.totalorder %s23, 0
      %p113 = por %p111, %p112
      %s114 = ssub.s32 %s17, %s24
      %p115 = scmp.eq.s32.totalorder %s114, 0
      %s117 = sadd.s32 %s116, 1
      %s118 = scalar_select %p115, %s116, %s117
      %p121 = pneg %p115
      %p122 = scmp.eq.s32.totalorder %s17, 1
      %p123 = por %p121, %p122
      %p124 = scmp.ne.s32.totalorder %s116, %s119
      %p125 = scmp.eq.s32.totalorder %s17, 0
      %p126 = por %p124, %p125
      %p127 = scmp.ne.s32.totalorder %s116, %s119
      %p128 = scmp.eq.s32.totalorder %s22, 1
      %p129 = por %p127, %p128
      %p130 = scmp.ne.s32.totalorder %s119, %s120
      %p131 = scmp.eq.s32.totalorder %s22, 0
      %p132 = por %p130, %p131
      %p133 = scmp.ne.s32.totalorder %s119, %s120
      %p134 = scmp.eq.s32.totalorder %s23, 1
      %p135 = por %p133, %p134
      %p137 = scmp.ne.s32.totalorder %s120, %s136
      %p138 = scmp.eq.s32.totalorder %s23, 0
      %p139 = por %p137, %p138
      %p140 = scmp.le.s32.totalorder 1, %s17
      %p141 = scmp.lt.s32.totalorder %s17, 3
      %p142 = pnand %p140, %p141
      %p143 = pneg %p142
      // Predicated region
      $region9: #{tpu_custom_call.1} parent=5 // pred_check
        _
      $region10: #{tpu_custom_call.1} parent=5 // pred_check_branch
        %145 = sbr.rel (%p142) target = $region12
      $region11: #{tpu_custom_call.1} parent=5 // pred_region
        %s146 = ssub.s32 %s17, 1
        // Predicated region
        $region13: #{tpu_custom_call.1} parent=11 // pred_check
          %p147 = pneg %p64
        $region14: #{tpu_custom_call.1} parent=11 // pred_check_branch
          %149 = sbr.rel (%p147) target = $region16
        $region15: #{tpu_custom_call.1} parent=11 // pred_region
          _
        $region16: #{tpu_custom_call.1} parent=11 // pred_fallthru
          _
        // Predicated region
        $region17: #{tpu_custom_call.1} parent=11 // pred_check
          %p150 = pneg %p85
        $region18: #{tpu_custom_call.1} parent=11 // pred_check_branch
          %152 = sbr.rel (%p150) target = $region20
        $region19: #{tpu_custom_call.1} parent=11 // pred_region
          _
        $region20: #{tpu_custom_call.1} parent=11 // pred_fallthru
          _
        // Predicated region
        $region21: #{tpu_custom_call.1} parent=11 // pred_check
          %p153 = pneg %p106
        $region22: #{tpu_custom_call.1} parent=11 // pred_check_branch
          %155 = sbr.rel (%p153) target = $region24
        $region23: #{tpu_custom_call.1} parent=11 // pred_region
          %s157 = ssub.s32 1024, 1024
          %158 = vsyncadd [#allocation6], %s157
          %s159 = sshll.u32 [#allocation5], 4
          %s160 = int_to_ptr.vmem [resolvable:$true] %s159
          %165 = dma.hbm_to_vmem [thread:$0]  %s3, 1024, %s160, [#allocation6], 64, 64, 4
        $region24: #{tpu_custom_call.1} parent=11 // pred_fallthru
          _
      $region12: #{tpu_custom_call.1} parent=5 // pred_fallthru
        _
      %p166 = scmp.lt.s32.totalorder %s17, 2
      // Predicated region
      $region25: #{tpu_custom_call.1} parent=5 // pred_check
        %p167 = pneg %p166
      $region26: #{tpu_custom_call.1} parent=5 // pred_check_branch
        %169 = sbr.rel (%p167) target = $region28
      $region27: #{tpu_custom_call.1} parent=5 // pred_region
        // Predicated region
        $region29: #{tpu_custom_call.1} parent=27 // pred_check
          %p170 = pneg %p37
        $region30: #{tpu_custom_call.1} parent=27 // pred_check_branch
          %172 = sbr.rel (%p170) target = $region32
        $region31: #{tpu_custom_call.1} parent=27 // pred_region
          %s173 = sand.u32 %s27, 1
          %s174 = scalar_lea.sflag [#allocation3], %s173
          %s175 = sand.u32 %s27, 1
          %s176 = smul.addr %s175, 32
          %s177 = scalar_lea.vmem [#allocation2], %s176
          %s178 = smul.u32 4, %s17
          %s179 = ssub.s32 7, %s178
          %p180 = scmp.lt.s32.totalorder %s179, 4
          %s181 = scalar_select %p180, %s179, 4
          %s182 = smul.u32 128, %s181
          %s184 = ssub.s32 512, %s182
          %185 = vsyncadd %s174, %s184
          %p186 = scmp.ne.s32.totalorder 0, %s182
          %s187 = smul.addr %s178, 128
          %s188 = scalar_lea.hbm %s0, %s187
          %s189 = smul.u32 8, %s181
          %s190 = sshll.u32 %s177, 4
          %s191 = int_to_ptr.vmem [resolvable:$true] %s190
          %s192 = sshll.u32 %s189, 4
          %196 = dma.hbm_to_vmem [thread:$0]  (%p186), %s188, %s192, %s191, %s174, 128, 128, 8
        $region32: #{tpu_custom_call.1} parent=27 // pred_fallthru
          _
      $region28: #{tpu_custom_call.1} parent=5 // pred_fallthru
        _
      %p197 = scmp.le.s32.totalorder 1, %s17
      %p198 = scmp.lt.s32.totalorder %s17, 3
      %p199 = pnand %p197, %p198
      %p200 = pneg %p199
      // Predicated region
      $region33: #{tpu_custom_call.1} parent=5 // pred_check
        _
      $region34: #{tpu_custom_call.1} parent=5 // pred_check_branch
        %202 = sbr.rel (%p199) target = $region36
      $region35: #{tpu_custom_call.1} parent=5 // pred_region
        %s203 = ssub.s32 %s17, 1
        %s204 = sand.u32 %s30, 1
        %s205 = scalar_lea.sflag [#allocation3], %s204
        %s206 = sand.u32 %s30, 1
        %s207 = smul.addr %s206, 32
        %s208 = scalar_lea.vmem [#allocation2], %s207
        // Predicated region
        $region37: #{tpu_custom_call.1} parent=35 // pred_check
          %p209 = pneg %p43
        $region38: #{tpu_custom_call.1} parent=35 // pred_check_branch
          %211 = sbr.rel (%p209) target = $region40
        $region39: #{tpu_custom_call.1} parent=35 // pred_region
          %212 = dma.done %s205, 512
        $region40: #{tpu_custom_call.1} parent=35 // pred_fallthru
          _
        // Predicated region
        $region41: #{tpu_custom_call.1} parent=35 // pred_check
          %p213 = pneg %p106
        $region42: #{tpu_custom_call.1} parent=35 // pred_check_branch
          %215 = sbr.rel (%p213) target = $region44
        $region43: #{tpu_custom_call.1} parent=35 // pred_region
          %216 = dma.done [#allocation6], 1024
        $region44: #{tpu_custom_call.1} parent=35 // pred_fallthru
          _
        %s217 = sand.u32 %s30, 1
        %s218 = scalar_lea.sflag [#allocation3], %s217
        %s219 = sand.u32 %s30, 1
        %s220 = smul.addr %s219, 32
        %s221 = scalar_lea.vmem [#allocation2], %s220
        %p222 = pneg %p43
        %p223 = pneg %p40
        %p224 = pneg %p64
        %p225 = pneg %p61
        %p226 = pneg %p85
        %p227 = pneg %p82
        %p228 = pneg %p106
        %p229 = pneg %p103
        %p230 = pneg %p132
        %p231 = pneg %p129
        %s232 = sand.u32 %s119, 1
        %s233 = scalar_lea.sflag [#allocation4], %s232
        %s234 = sand.u32 %s119, 1
        %s235 = smul.addr %s234, 32
        %s236 = scalar_lea.vmem [#allocation7], %s235
        %s237 = smul.u32 4, %s22
        %s238 = ssub.s32 7, %s237
        %p239 = scmp.lt.s32.totalorder %s238, 4
        %s240 = scalar_select %p239, %s238, 4
        %s241 = smul.u32 128, %s240
        %s242 = smul.u32 4, %s22
        %s243 = ssub.s32 7, %s242
        %p244 = scmp.lt.s32.totalorder %s243, 4
        %s245 = scalar_select %p244, %s243, 4
        %s246 = smul.u32 128, %s245
        %v248 = vld [vmem:[#allocation5] sm:$0xf]
        %v249 = vld [vmem:[#allocation5 + $0x4] sm:$0xf]
        %v250 = vld [vmem:[#allocation5 + $0x8] sm:$0xf]
        %v251 = vld [vmem:[#allocation5 + $0xc] sm:$0xf]
        %v252 = vld [vmem:[#allocation5 + $0x10] sm:$0xf]
        %v253 = vld [vmem:[#allocation5 + $0x14] sm:$0xf]
        %v254 = vld [vmem:[#allocation5 + $0x18] sm:$0xf]
        %v255 = vld [vmem:[#allocation5 + $0x1c] sm:$0xf]
        %v256 = vld [vmem:[#allocation5 + $0x20] sm:$0xf]
        %v257 = vld [vmem:[#allocation5 + $0x24] sm:$0xf]
        %v258 = vld [vmem:[#allocation5 + $0x28] sm:$0xf]
        %v259 = vld [vmem:[#allocation5 + $0x2c] sm:$0xf]
        %v260 = vld [vmem:[#allocation5 + $0x30] sm:$0xf]
        %v261 = vld [vmem:[#allocation5 + $0x34] sm:$0xf]
        %v262 = vld [vmem:[#allocation5 + $0x38] sm:$0xf]
        %v263 = vld [vmem:[#allocation5 + $0x3c] sm:$0xf]
        %v264 = vld [vmem:[%s208] sm:$0xff]
        %v265 = vld [vmem:[%s208 + $0x8] sm:$0xff]
        %v266 = vld [vmem:[%s208 + $0x10] sm:$0xff]
        %v267 = vld [vmem:[%s208 + $0x18] sm:$0xff]
        %v268 = vpack.c.bf16 %v265, %v264
        %v269 = vpack.c.bf16 %v267, %v266
        %v270 = vunpack.c.l.bf16 %v268
        %v271 = vunpack.c.h.bf16 %v268
        %v272 = vunpack.c.l.bf16 %v269
        %v273 = vunpack.c.h.bf16 %v269
        %v274 = vsub.f32 %v264, %v270
        %v275 = vsub.f32 %v265, %v271
        %v276 = vsub.f32 %v266, %v272
        %v277 = vsub.f32 %v267, %v273
        %v278 = vpack.c.bf16 %v275, %v274
        %v279 = vpack.c.bf16 %v277, %v276
        %v296 = vunpack.c.l.b16 %v248
        %v297 = vunpack.c.l.b16 %v249
        %v298 = vunpack.c.l.b16 %v250
        %v299 = vunpack.c.l.b16 %v251
        %v300 = vunpack.c.l.b16 %v252
        %v301 = vunpack.c.l.b16 %v253
        %v302 = vunpack.c.l.b16 %v254
        %v303 = vunpack.c.l.b16 %v255
        %v304 = vunpack.c.l.b16 %v256
        %v305 = vunpack.c.l.b16 %v257
        %v306 = vunpack.c.l.b16 %v258
        %v307 = vunpack.c.l.b16 %v259
        %v308 = vunpack.c.l.b16 %v260
        %v309 = vunpack.c.l.b16 %v261
        %v310 = vunpack.c.l.b16 %v262
        %v311 = vunpack.c.l.b16 %v263
        %v312 = vpack.c.b16 %v297, %v296
        %v313 = vpack.c.b16 %v299, %v298
        %v314 = vpack.c.b16 %v301, %v300
        %v315 = vpack.c.b16 %v303, %v302
        %v316 = vpack.c.b16 %v305, %v304
        %v317 = vpack.c.b16 %v307, %v306
        %v318 = vpack.c.b16 %v309, %v308
        %v319 = vpack.c.b16 %v311, %v310
        %328 = vmatprep.subr.bf16.mxu0 0
        %329 = vmatpush1.bf16.msra.mxu0 %v319
        %330 = vmatprep.subr.bf16.mxu0 0
        %331 = vmatpush1.bf16.msra.mxu0 %v318
        %332 = vmatprep.subr.bf16.mxu0 0
        %333 = vmatpush1.bf16.msra.mxu0 %v317
        %334 = vmatprep.subr.bf16.mxu0 0
        %335 = vmatpush1.bf16.msra.mxu0 %v316
        %336 = vmatprep.subr.bf16.mxu0 0
        %337 = vmatpush1.bf16.msra.mxu0 %v315
        %338 = vmatprep.subr.bf16.mxu0 0
        %339 = vmatpush1.bf16.msra.mxu0 %v314
        %340 = vmatprep.subr.bf16.mxu0 0
        %341 = vmatpush1.bf16.msra.mxu0 %v313
        %342 = vmatprep.subr.bf16.mxu0 0
        %343 = vmatpush1.bf16.msra.mxu0 %v312
        %344 = vmatprep.subr.bf16.mxu0 0
        %345 = vmatpush2.bf16.msra.mxu0 0
        %346 = vmatprep.subr.bf16.mxu0 0
        %347 = vmatpush2.bf16.msra.mxu0 0
        %348 = vmatprep.subr.bf16.mxu0 0
        %349 = vmatpush2.bf16.msra.mxu0 0
        %350 = vmatprep.subr.bf16.mxu0 0
        %351 = vmatpush2.bf16.msra.mxu0 0
        %352 = vmatprep.subr.bf16.mxu0 0
        %353 = vmatpush2.bf16.msra.mxu0 0
        %354 = vmatprep.subr.bf16.mxu0 0
        %355 = vmatpush2.bf16.msra.mxu0 0
        %356 = vmatprep.subr.bf16.mxu0 0
        %357 = vmatpush2.bf16.msra.mxu0 0
        %358 = vmatprep.subr.bf16.mxu0 0
        %359 = vmatpush2.bf16.msra.mxu0 0
        %360 = vmatprep.mubr.bf16.mxu0 0
        %361 = vmatmul.mubr.bf16.gmra.mxu0 %v278
        %v362 = vpop.f32.mrf.mxu0
        %v363 = vadd.f32 0.0, %v362
        %v364 = vpop.f32.mrf.mxu0
        %v365 = vpop.f32.mrf.mxu0
        %v366 = vadd.f32 0.0, %v365
        %v367 = vpop.f32.mrf.mxu0
        %368 = vmatprep.mubr.bf16.mxu0 0
        %369 = vmatmul.mubr.bf16.gmra.mxu0 %v279
        %v370 = vpop.f32.mrf.mxu0
        %v371 = vadd.f32 0.0, %v370
        %v372 = vpop.f32.mrf.mxu0
        %v373 = vpop.f32.mrf.mxu0
        %v374 = vadd.f32 0.0, %v373
        %v375 = vpop.f32.mrf.mxu0
        %376 = vdwg.mxu0
        %377 = vmatprep.subr.bf16.mxu0 0
        %378 = vmatpush1.bf16.msra.mxu0 %v319
        %379 = vmatprep.subr.bf16.mxu0 0
        %380 = vmatpush1.bf16.msra.mxu0 %v318
        %381 = vmatprep.subr.bf16.mxu0 0
        %382 = vmatpush1.bf16.msra.mxu0 %v317
        %383 = vmatprep.subr.bf16.mxu0 0
        %384 = vmatpush1.bf16.msra.mxu0 %v316
        %385 = vmatprep.subr.bf16.mxu0 0
        %386 = vmatpush1.bf16.msra.mxu0 %v315
        %387 = vmatprep.subr.bf16.mxu0 0
        %388 = vmatpush1.bf16.msra.mxu0 %v314
        %389 = vmatprep.subr.bf16.mxu0 0
        %390 = vmatpush1.bf16.msra.mxu0 %v313
        %391 = vmatprep.subr.bf16.mxu0 0
        %392 = vmatpush1.bf16.msra.mxu0 %v312
        %393 = vmatprep.subr.bf16.mxu0 0
        %394 = vmatpush2.bf16.msra.mxu0 0
        %395 = vmatprep.subr.bf16.mxu0 0
        %396 = vmatpush2.bf16.msra.mxu0 0
        %397 = vmatprep.subr.bf16.mxu0 0
        %398 = vmatpush2.bf16.msra.mxu0 0
        %399 = vmatprep.subr.bf16.mxu0 0
        %400 = vmatpush2.bf16.msra.mxu0 0
        %401 = vmatprep.subr.bf16.mxu0 0
        %402 = vmatpush2.bf16.msra.mxu0 0
        %403 = vmatprep.subr.bf16.mxu0 0
        %404 = vmatpush2.bf16.msra.mxu0 0
        %405 = vmatprep.subr.bf16.mxu0 0
        %406 = vmatpush2.bf16.msra.mxu0 0
        %407 = vmatprep.subr.bf16.mxu0 0
        %408 = vmatpush2.bf16.msra.mxu0 0
        %409 = vmatprep.mubr.bf16.mxu0 0
        %410 = vmatmul.mubr.bf16.gmra.mxu0 %v268
        %v411 = vpop.f32.mrf.mxu0
        %v412 = vadd.f32 %v363, %v411
        %v413 = vpop.f32.mrf.mxu0
        %v414 = vpop.f32.mrf.mxu0
        %v415 = vadd.f32 %v366, %v414
        %v416 = vpop.f32.mrf.mxu0
        %417 = vmatprep.mubr.bf16.mxu0 0
        %418 = vmatmul.mubr.bf16.gmra.mxu0 %v269
        %v419 = vpop.f32.mrf.mxu0
        %v420 = vadd.f32 %v371, %v419
        %v421 = vpop.f32.mrf.mxu0
        %v422 = vpop.f32.mrf.mxu0
        %v423 = vadd.f32 %v374, %v422
        %v424 = vpop.f32.mrf.mxu0
        %425 = vdwg.mxu0
        %v426 = vmul.f32 %v412, 0.03125
        %v427 = vmul.f32 %v415, 0.03125
        %v428 = vmul.f32 %v420, 0.03125
        %v429 = vmul.f32 %v423, 0.03125
        %v430 = vsub.f32 %v264, %v426
        %v431 = vsub.f32 %v265, %v427
        %v432 = vsub.f32 %v266, %v428
        %v433 = vsub.f32 %v267, %v429
        %v434 = vmul.f32 %v430, %v430
        %v435 = vmul.f32 %v431, %v431
        %v436 = vmul.f32 %v432, %v432
        %v437 = vmul.f32 %v433, %v433
        %v438 = vpack.c.bf16 %v435, %v434
        %v439 = vpack.c.bf16 %v437, %v436
        %v440 = vunpack.c.l.bf16 %v438
        %v441 = vunpack.c.h.bf16 %v438
        %v442 = vunpack.c.l.bf16 %v439
        %v443 = vunpack.c.h.bf16 %v439
        %v444 = vsub.f32 %v434, %v440
        %v445 = vsub.f32 %v435, %v441
        %v446 = vsub.f32 %v436, %v442
        %v447 = vsub.f32 %v437, %v443
        %v448 = vpack.c.bf16 %v445, %v444
        %v449 = vpack.c.bf16 %v447, %v446
        %450 = vmatprep.subr.bf16.mxu0 0
        %451 = vmatpush1.bf16.msra.mxu0 %v319
        %452 = vmatprep.subr.bf16.mxu0 0
        %453 = vmatpush1.bf16.msra.mxu0 %v318
        %454 = vmatprep.subr.bf16.mxu0 0
        %455 = vmatpush1.bf16.msra.mxu0 %v317
        %456 = vmatprep.subr.bf16.mxu0 0
        %457 = vmatpush1.bf16.msra.mxu0 %v316
        %458 = vmatprep.subr.bf16.mxu0 0
        %459 = vmatpush1.bf16.msra.mxu0 %v315
        %460 = vmatprep.subr.bf16.mxu0 0
        %461 = vmatpush1.bf16.msra.mxu0 %v314
        %462 = vmatprep.subr.bf16.mxu0 0
        %463 = vmatpush1.bf16.msra.mxu0 %v313
        %464 = vmatprep.subr.bf16.mxu0 0
        %465 = vmatpush1.bf16.msra.mxu0 %v312
        %466 = vmatprep.subr.bf16.mxu0 0
        %467 = vmatpush2.bf16.msra.mxu0 0
        %468 = vmatprep.subr.bf16.mxu0 0
        %469 = vmatpush2.bf16.msra.mxu0 0
        %470 = vmatprep.subr.bf16.mxu0 0
        %471 = vmatpush2.bf16.msra.mxu0 0
        %472 = vmatprep.subr.bf16.mxu0 0
        %473 = vmatpush2.bf16.msra.mxu0 0
        %474 = vmatprep.subr.bf16.mxu0 0
        %475 = vmatpush2.bf16.msra.mxu0 0
        %476 = vmatprep.subr.bf16.mxu0 0
        %477 = vmatpush2.bf16.msra.mxu0 0
        %478 = vmatprep.subr.bf16.mxu0 0
        %479 = vmatpush2.bf16.msra.mxu0 0
        %480 = vmatprep.subr.bf16.mxu0 0
        %481 = vmatpush2.bf16.msra.mxu0 0
        %482 = vmatprep.mubr.bf16.mxu0 0
        %483 = vmatmul.mubr.bf16.gmra.mxu0 %v448
        %v484 = vpop.f32.mrf.mxu0
        %v485 = vadd.f32 0.0, %v484
        %v486 = vpop.f32.mrf.mxu0
        %v487 = vpop.f32.mrf.mxu0
        %v488 = vadd.f32 0.0, %v487
        %v489 = vpop.f32.mrf.mxu0
        %490 = vmatprep.mubr.bf16.mxu0 0
        %491 = vmatmul.mubr.bf16.gmra.mxu0 %v449
        %v492 = vpop.f32.mrf.mxu0
        %v493 = vadd.f32 0.0, %v492
        %v494 = vpop.f32.mrf.mxu0
        %v495 = vpop.f32.mrf.mxu0
        %v496 = vadd.f32 0.0, %v495
        %v497 = vpop.f32.mrf.mxu0
        %498 = vdwg.mxu0
        %499 = vmatprep.subr.bf16.mxu0 0
        %500 = vmatpush1.bf16.msra.mxu0 %v319
        %501 = vmatprep.subr.bf16.mxu0 0
        %502 = vmatpush1.bf16.msra.mxu0 %v318
        %503 = vmatprep.subr.bf16.mxu0 0
        %504 = vmatpush1.bf16.msra.mxu0 %v317
        %505 = vmatprep.subr.bf16.mxu0 0
        %506 = vmatpush1.bf16.msra.mxu0 %v316
        %507 = vmatprep.subr.bf16.mxu0 0
        %508 = vmatpush1.bf16.msra.mxu0 %v315
        %509 = vmatprep.subr.bf16.mxu0 0
        %510 = vmatpush1.bf16.msra.mxu0 %v314
        %511 = vmatprep.subr.bf16.mxu0 0
        %512 = vmatpush1.bf16.msra.mxu0 %v313
        %513 = vmatprep.subr.bf16.mxu0 0
        %514 = vmatpush1.bf16.msra.mxu0 %v312
        %515 = vmatprep.subr.bf16.mxu0 0
        %516 = vmatpush2.bf16.msra.mxu0 0
        %517 = vmatprep.subr.bf16.mxu0 0
        %518 = vmatpush2.bf16.msra.mxu0 0
        %519 = vmatprep.subr.bf16.mxu0 0
        %520 = vmatpush2.bf16.msra.mxu0 0
        %521 = vmatprep.subr.bf16.mxu0 0
        %522 = vmatpush2.bf16.msra.mxu0 0
        %523 = vmatprep.subr.bf16.mxu0 0
        %524 = vmatpush2.bf16.msra.mxu0 0
        %525 = vmatprep.subr.bf16.mxu0 0
        %526 = vmatpush2.bf16.msra.mxu0 0
        %527 = vmatprep.subr.bf16.mxu0 0
        %528 = vmatpush2.bf16.msra.mxu0 0
        %529 = vmatprep.subr.bf16.mxu0 0
        %530 = vmatpush2.bf16.msra.mxu0 0
        %531 = vmatprep.mubr.bf16.mxu0 0
        %532 = vmatmul.mubr.bf16.gmra.mxu0 %v438
        %v533 = vpop.f32.mrf.mxu0
        %v534 = vadd.f32 %v485, %v533
        %v535 = vpop.f32.mrf.mxu0
        %v536 = vpop.f32.mrf.mxu0
        %v537 = vadd.f32 %v488, %v536
        %v538 = vpop.f32.mrf.mxu0
        %539 = vmatprep.mubr.bf16.mxu0 0
        %540 = vmatmul.mubr.bf16.gmra.mxu0 %v439
        %v541 = vpop.f32.mrf.mxu0
        %v542 = vadd.f32 %v493, %v541
        %v543 = vpop.f32.mrf.mxu0
        %v544 = vpop.f32.mrf.mxu0
        %v545 = vadd.f32 %v496, %v544
        %v546 = vpop.f32.mrf.mxu0
        %547 = vdwg.mxu0
        %v548 = vmul.f32 %v534, 0.03125
        %v549 = vmul.f32 %v537, 0.03125
        %v550 = vmul.f32 %v542, 0.03125
        %v551 = vmul.f32 %v545, 0.03125
        %v552 = vadd.f32 %v548, 1e-05
        %v553 = vadd.f32 %v549, 1e-05
        %v554 = vadd.f32 %v550, 1e-05
        %v555 = vadd.f32 %v551, 1e-05
        %v556 = vrsqrt.pop %v552
        %v557 = vrsqrt.pop %v553
        %v558 = vrsqrt.pop %v554
        %v559 = vrsqrt.pop %v555
        %v560 = vmul.f32 %v430, %v556
        %v561 = vmul.f32 %v431, %v557
        %v562 = vmul.f32 %v432, %v558
        %v563 = vmul.f32 %v433, %v559
        %v564 = vld [vmem:[%s1] sm:$0x1]
        %v566 = vlaneseq
        %v567 = vshrl.u32 %v566, 7
        %v568 = vsub.s32 0, %v567
        %v569 = vrot.slane %v564, %v568
        %v571 = vmul.f32 %v560, %v569
        %v572 = vmul.f32 %v561, %v569
        %v573 = vmul.f32 %v562, %v569
        %v574 = vmul.f32 %v563, %v569
        %v575 = vld [vmem:[%s2] sm:$0x1]
        %v577 = vlaneseq
        %v578 = vshrl.u32 %v577, 7
        %v579 = vsub.s32 0, %v578
        %v580 = vrot.slane %v575, %v579
        %v582 = vadd.f32 %v571, %v580
        %v583 = vadd.f32 %v572, %v580
        %v584 = vadd.f32 %v573, %v580
        %v585 = vadd.f32 %v574, %v580
        %586 = vst [vmem:[%s236] sm:$0xff] %v582
        %587 = vst [vmem:[%s236 + $0x8] sm:$0xff] %v583
        %588 = vst [vmem:[%s236 + $0x10] sm:$0xff] %v584
        %589 = vst [vmem:[%s236 + $0x18] sm:$0xff] %v585
        %s590 = sand.u32 %s119, 1
        %s591 = scalar_lea.sflag [#allocation4], %s590
        %s592 = sand.u32 %s119, 1
        %s593 = smul.addr %s592, 32
        %s594 = scalar_lea.vmem [#allocation7], %s593
        // Predicated region
        $region45: #{tpu_custom_call.1} parent=35 // pred_check
          %p595 = pneg %p129
        $region46: #{tpu_custom_call.1} parent=35 // pred_check_branch
          %597 = sbr.rel (%p595) target = $region48
        $region47: #{tpu_custom_call.1} parent=35 // pred_region
          %s598 = smul.u32 4, %s22
          %s599 = ssub.s32 7, %s598
          %p600 = scmp.lt.s32.totalorder %s599, 4
          %s601 = scalar_select %p600, %s599, 4
          %s602 = smul.u32 128, %s601
          %s604 = ssub.s32 512, %s602
          %605 = vsyncadd %s591, %s604
          %p606 = scmp.ne.s32.totalorder 0, %s602
          %s607 = smul.addr %s598, 128
          %s608 = scalar_lea.hbm %s4, %s607
          %s609 = smul.u32 8, %s601
          %s610 = sshll.u32 %s594, 4
          %s611 = int_to_ptr.vmem [resolvable:$true] %s610
          %s612 = sshll.u32 %s609, 4
          %616 = dma.vmem_to_hbm [thread:$0]  (%p606), %s611, %s612, %s608, %s591, 128, 128, 8
        $region48: #{tpu_custom_call.1} parent=35 // pred_fallthru
          _
      $region36: #{tpu_custom_call.1} parent=5 // pred_fallthru
        _
      %p617 = scmp.le.s32.totalorder 2, %s17
      // Predicated region
      $region49: #{tpu_custom_call.1} parent=5 // pred_check
        %p618 = pneg %p617
      $region50: #{tpu_custom_call.1} parent=5 // pred_check_branch
        %620 = sbr.rel (%p618) target = $region52
      $region51: #{tpu_custom_call.1} parent=5 // pred_region
        %s621 = ssub.s32 %s17, 2
        // Predicated region
        $region53: #{tpu_custom_call.1} parent=51 // pred_check
          %p622 = pneg %p135
        $region54: #{tpu_custom_call.1} parent=51 // pred_check_branch
          %624 = sbr.rel (%p622) target = $region56
        $region55: #{tpu_custom_call.1} parent=51 // pred_region
          %s625 = sand.u32 %s120, 1
          %s626 = scalar_lea.sflag [#allocation4], %s625
          %s627 = sand.u32 %s120, 1
          %s628 = smul.addr %s627, 32
          %s629 = scalar_lea.vmem [#allocation7], %s628
          %630 = dma.done %s626, 512
        $region56: #{tpu_custom_call.1} parent=51 // pred_fallthru
          _
      $region52: #{tpu_custom_call.1} parent=5 // pred_fallthru
        _
    $region6: #{tpu_custom_call.1} parent=1 // loop_footer
      %s21 = sadd.s32 1, %s17
    $region7: #{tpu_custom_call.1} parent=1 // loop_footer_branch
      %16 = sbr.rel target = $region3
    $region8: #{tpu_custom_call.1} parent=1 // loop_exit
      _
    %631 = vsyncpa [#allocation3], 1
    %s632 = scalar_lea.sflag [#allocation3], 1
    %633 = vsyncpa %s632, 1
    %634 = vsyncpa [#allocation6], 1
    %635 = vsyncpa [#allocation4], 1
    %s636 = scalar_lea.sflag [#allocation4], 1
    %637 = vsyncpa %s636, 1

</llo_original>
